<compile_context>
chip_gen: v5e
topology: v5e:2x2
jax: 0.10.0
libtpu: 0.0.40
codegen_flags: <defaults>
</compile_context>

<pallas_src>
import functools

import jax
import jax.numpy as jnp
from jax.experimental import pallas as pl
from jax.experimental.pallas import tpu as pltpu


def _round_up(x, m):
    return (x + m - 1) // m * m


def _fused_conv_bn_relu_kernel(p_ref, w_ref, gamma_ref, beta_ref, o_ref, stats_ref,
                               *, inv_count, eps, is_relu):
    """Fused conv + BN(batch stats) + optional ReLU.

    Grid = (lane_block b, sweep p, M tile i).  Blocks per grid point:
      p_ref    : (1, TM, Kb_pad)   bf16 im2col patches (lane-block b, M tile i)
      w_ref    : (1, Kb_pad, L)    bf16 (block-diagonal) weights, resident per b
      gamma_ref, beta_ref : (1, 1, L) f32 BN affine, resident per b
      o_ref    : (1, TM, L)        final output tile (written on sweep 1 only)
      stats_ref: (8, L) f32 VMEM scratch; row0 = sum(y), row1 = sum(y*y)
    """
    sweep = pl.program_id(1)
    i = pl.program_id(2)

    # One lane-dense MXU matmul (bf16 inputs, f32 accumulation).  It is
    # recomputed on sweep 1 so the f32 conv intermediate never touches HBM.
    y = jnp.dot(p_ref[0], w_ref[0], preferred_element_type=jnp.float32)

    @pl.when(sweep == 0)
    def _accumulate_stats():
        @pl.when(i == 0)
        def _():
            stats_ref[...] = jnp.zeros_like(stats_ref)
        stats_ref[0:1, :] += jnp.sum(y, axis=0, keepdims=True)
        stats_ref[1:2, :] += jnp.sum(y * y, axis=0, keepdims=True)

    @pl.when(sweep == 1)
    def _normalize():
        mean = stats_ref[0:1, :] * inv_count
        var = stats_ref[1:2, :] * inv_count - mean * mean  # biased var (BN train)
        # TODO(synk): switch to a shifted-center / Welford accumulation if layers
        # with |mean| >> std show cancellation in this single-pass variance.
        inv = jax.lax.rsqrt(var + eps)
        scale = gamma_ref[0] * inv            # (1, L)
        shift = beta_ref[0] - mean * scale    # (1, L)
        out = y * scale + shift               # one FMA per element on the VPU
        if is_relu:
            out = jnp.maximum(out, 0.0)
        o_ref[0] = out.astype(o_ref.dtype)


def conv_bn_relu(x_nchw, weight, gamma, beta, *, stride=1, padding=0, groups=1,
                 is_relu=False, eps=1e-5, tm=512, mxu_dtype=jnp.bfloat16):
    """PyTorch-semantics wrapper.
      x_nchw : (N, Cin, H, W);  weight : (Cout, Cin//groups, KH, KW)  (bias=False)
      gamma, beta : (Cout,)  BatchNorm2d affine.  Returns NCHW; BN uses batch stats.
    """
    n, c_in, h, w_sp = x_nchw.shape
    c_out, cin_g, k_h, k_w = weight.shape
    assert c_in == cin_g * groups and c_out % groups == 0
    cout_g = c_out // groups

    h_out = (h + 2 * padding - k_h) // stride + 1
    w_out = (w_sp + 2 * padding - k_w) // stride + 1
    m = n * h_out * w_out

    # ---- lane packing of groups --------------------------------------------
    # Pack gpb groups (largest divisor of `groups` with gpb*cout_g <= 128) onto
    # one lane block using a block-diagonal weight, keeping stores unmasked and
    # not inflating output/BN bytes when cout_g is small.
    if cout_g >= 128:
        gpb = 1
    else:
        gpb = 1
        for d in range(1, groups + 1):
            if groups % d == 0 and d * cout_g <= 128:
                gpb = d
    nb = groups // gpb                  # number of lane blocks
    cpb = cout_g * gpb                  # real channels per lane block
    lane = _round_up(cpb, 128)          # lane-dense output width
    kg = k_h * k_w * cin_g              # per-group contraction
    kgb = kg * gpb                      # per-block contraction (block-diagonal)
    kgb_pad = _round_up(kgb, 128)

    # ---- M tiling / VMEM budget ---------------------------------------------
    tm = max(8, min(_round_up(int(tm), 8), _round_up(m, 8)))

    def _footprint(t):  # double-buffered per-step VMEM working set (bytes)
        return (2 * t * kgb_pad * 2        # patches (bf16)
                + 2 * t * lane * 4         # output tile (f32)
                + 2 * kgb_pad * lane * 2   # weights (bf16)
                + (8 + 4) * lane * 4)      # stats scratch + gamma/beta

    # Keep the working set comfortably inside v7x's 64 MiB physical VMEM
    # (v5e/v6e have 128 MiB, so this is conservative there).
    # TODO(synk): for very large per-block contractions, add a K grid axis with a
    # VMEM accumulator instead of only shrinking tm.
    while tm > 8 and _footprint(tm) > 40 * 1024 * 1024:
        tm = max(8, _round_up(tm // 2, 8))
    m_pad = _round_up(m, tm)
    num_m = m_pad // tm
    vmem_bytes = 56 * 1024 * 1024  # above the 32 MiB scoped default, < v7x physical

    # ---- wrapper-side im2col glue (plain JAX): NCHW -> lane-dense patches ----
    # TODO(synk): form the taps in-kernel from an NHWC halo tile (manual DMA +
    # shifted slices / pltpu.roll) to remove the KH*KW HBM read amplification.
    x = jnp.transpose(x_nchw, (0, 2, 3, 1))                       # NHWC
    x = jnp.pad(x, ((0, 0), (padding, padding), (padding, padding), (0, 0)))
    h_span = (h_out - 1) * stride + 1
    w_span = (w_out - 1) * stride + 1

    def _group_patch(g):
        xg = x[..., g * cin_g:(g + 1) * cin_g]
        taps = []
        for ih in range(k_h):
            for iw in range(k_w):
                taps.append(xg[:, ih:ih + h_span:stride, iw:iw + w_span:stride, :])
        return jnp.concatenate(taps, axis=-1).reshape(m, kg)      # (kh, kw, cin)

    blocks = []
    for b in range(nb):
        cols = [_group_patch(b * gpb + j) for j in range(gpb)]
        blocks.append(jnp.concatenate(cols, axis=-1))             # (m, kgb)
    # Zero M-pad rows and zero contraction columns contribute nothing to the
    # matmul or the BN sums (we divide by the true M), so padding is exact.
    patches = jnp.stack(blocks, axis=0).astype(mxu_dtype)         # bf16 MXU input
    patches = jnp.pad(patches, ((0, 0), (0, m_pad - m), (0, kgb_pad - kgb)))

    # weight (Cout, Cin_g, KH, KW) -> per-block block-diagonal (Kgb_pad, lane),
    # (kh, kw, cin) contraction ordering to match the tap concatenation above.
    w_k = jnp.transpose(weight, (2, 3, 1, 0)).reshape(kg, c_out).astype(jnp.float32)
    w_blocks = []
    for b in range(nb):
        wb = jnp.zeros((kgb, cpb), jnp.float32)
        for j in range(gpb):
            g = b * gpb + j
            wb = wb.at[j * kg:(j + 1) * kg, j * cout_g:(j + 1) * cout_g].set(
                w_k[:, g * cout_g:(g + 1) * cout_g])
        w_blocks.append(wb)
    w_b = jnp.stack(w_blocks, axis=0).astype(mxu_dtype)
    w_b = jnp.pad(w_b, ((0, 0), (0, kgb_pad - kgb), (0, lane - cpb)))

    def _pack_per_channel(v):
        vb = v.astype(jnp.float32).reshape(nb, cpb)
        vb = jnp.pad(vb, ((0, 0), (0, lane - cpb)))
        return vb.reshape(nb, 1, lane)

    gamma_p = _pack_per_channel(gamma)
    beta_p = _pack_per_channel(beta)

    kernel = functools.partial(
        _fused_conv_bn_relu_kernel,
        inv_count=1.0 / float(m), eps=float(eps), is_relu=bool(is_relu))

    # Output index_map: during sweep 0 (p == 0) every M tile maps to block (b, 0),
    # so the untouched output buffer is never cycled through HBM; sweep 1 visits
    # each (b, i) block exactly once and writes the final normalized tile.
    out_pad = pl.pallas_call(
        kernel,
        out_shape=jax.ShapeDtypeStruct((nb, m_pad, lane), x_nchw.dtype),
        grid_spec=pltpu.PrefetchScalarGridSpec(
            num_scalar_prefetch=0,
            grid=(nb, 2, num_m),
            in_specs=[
                pl.BlockSpec((1, tm, kgb_pad), lambda b, p, i: (b, i, 0)),
                pl.BlockSpec((1, kgb_pad, lane), lambda b, p, i: (b, 0, 0)),
                pl.BlockSpec((1, 1, lane), lambda b, p, i: (b, 0, 0)),
                pl.BlockSpec((1, 1, lane), lambda b, p, i: (b, 0, 0)),
            ],
            out_specs=pl.BlockSpec((1, tm, lane), lambda b, p, i: (b, i * p, 0)),
            scratch_shapes=[pltpu.VMEM((8, lane), jnp.float32)]),
        compiler_params=pltpu.CompilerParams(
            dimension_semantics=("parallel", "arbitrary", "arbitrary"),
            vmem_limit_bytes=vmem_bytes),
    )(patches, w_b, gamma_p, beta_p)
    # TODO(synk): when nb == 1 on v7x (2 TensorCores) the only parallel axis has
    # extent 1; split M across a leading parallel axis with per-core partial
    # stats + a combine step to give the second core work.

    # Un-pad and hand back NCHW to match the PyTorch module (callers that can
    # consume NHWC should skip this transpose).
    out = out_pad[:, :m, :cpb]                               # (nb, M, cpb)
    out = jnp.transpose(out, (1, 0, 2)).reshape(m, c_out)    # channel = b*cpb + j
    out = out.reshape(n, h_out, w_out, c_out)
    return jnp.transpose(out, (0, 3, 1, 2))


def _reference(x, weight, gamma, beta, *, stride, padding, groups, is_relu, eps,
               cast_dtype=None):
    if cast_dtype is not None:
        # Mirror the kernel's deliberate bf16 MXU-input cast (f32 accumulation).
        x = x.astype(cast_dtype).astype(jnp.float32)
        weight = weight.astype(cast_dtype).astype(jnp.float32)
    y = jax.lax.conv_general_dilated(
        x, weight, (stride, stride),
        [(padding, padding), (padding, padding)],
        dimension_numbers=("NCHW", "OIHW", "NCHW"),
        feature_group_count=groups)
    mean = jnp.mean(y, axis=(0, 2, 3), keepdims=True)
    var = jnp.mean((y - mean) ** 2, axis=(0, 2, 3), keepdims=True)
    y = (y - mean) * jax.lax.rsqrt(var + eps)
    y = y * gamma.reshape(1, -1, 1, 1) + beta.reshape(1, -1, 1, 1)
    if is_relu:
        y = jnp.maximum(y, 0.0)
    return y


def _check_case(key, *, n, c_in, h, w, c_out, k, stride, padding, groups,
                is_relu, tm):
    kx, kw = jax.random.split(key)
    x = jax.random.normal(kx, (n, c_in, h, w), dtype=jnp.float32)
    fan_in = (c_in // groups) * k * k
    weight = jax.random.uniform(
        kw, (c_out, c_in // groups, k, k), dtype=jnp.float32,
        minval=-1.0, maxval=1.0) / jnp.sqrt(jnp.float32(fan_in))
    gamma = jnp.ones((c_out,), jnp.float32)   # BatchNorm2d init: weight=1, bias=0
    beta = jnp.zeros((c_out,), jnp.float32)

    out = conv_bn_relu(x, weight, gamma, beta, stride=stride, padding=padding,
                       groups=groups, is_relu=is_relu, tm=tm)
    out = jax.block_until_ready(out)

    h_out = (h + 2 * padding - k) // stride + 1
    w_out = (w + 2 * padding - k) // stride + 1
    assert out.shape == (n, c_out, h_out, w_out), out.shape

    # Tight check against a reference that applies the same bf16 input cast.
    ref_bf16 = _reference(x, weight, gamma, beta, stride=stride, padding=padding,
                          groups=groups, is_relu=is_relu, eps=1e-5,
                          cast_dtype=jnp.bfloat16)
    ref_bf16 = jax.block_until_ready(ref_bf16)
    if not jnp.allclose(out, ref_bf16, atol=1e-3, rtol=1e-3):
        raise AssertionError("Pallas kernel mismatch vs bf16-matched reference")
    # Loose check against the full-f32 reference: documents the deliberate bf16
    # MXU-input precision trade (per the perf review), not a bug.
    ref_f32 = _reference(x, weight, gamma, beta, stride=stride, padding=padding,
                         groups=groups, is_relu=is_relu, eps=1e-5)
    if not jnp.allclose(out, ref_f32, atol=5e-2, rtol=5e-2):
        raise AssertionError("Pallas kernel mismatch vs f32 reference beyond bf16 tolerance")


if __name__ == "__main__":
    key = jax.random.PRNGKey(0)
    k1, k2 = jax.random.split(key)
    # Module config: ConvBnRelu(in=4, out=8, kernel=3, stride=1, padding=1,
    #                           groups=1, is_relu=True)
    _check_case(k1, n=2, c_in=4, h=16, w=16, c_out=8, k=3, stride=1, padding=1,
                groups=1, is_relu=True, tm=512)
    # Grouped / strided config: exercises group lane-packing (block-diagonal
    # weight), multiple M tiles (stats accumulation + output revisit), no ReLU.
    _check_case(k2, n=2, c_in=8, h=16, w=16, c_out=16, k=3, stride=2, padding=1,
                groups=4, is_relu=False, tm=64)
    print("KERNEL_OK")
</pallas_src>

<mosaic_0001>
module attributes {stable_mosaic.version = 11 : i64} {
  func.func @_fused_conv_bn_relu_kernel(%arg0: i32, %arg1: i32, %arg2: i32, %arg3: memref<1x512x128xbf16, #tpu.memory_space<vmem>>, %arg4: memref<1x128x128xbf16, #tpu.memory_space<vmem>>, %arg5: memref<1x1x128xf32, #tpu.memory_space<vmem>>, %arg6: memref<1x1x128xf32, #tpu.memory_space<vmem>>, %arg7: memref<1x512x128xf32, #tpu.memory_space<vmem>>, %arg8: memref<8x128xf32, #tpu.memory_space<vmem>>) attributes {dimension_semantics = [#tpu.dimension_semantics<parallel>, #tpu.dimension_semantics<arbitrary>, #tpu.dimension_semantics<arbitrary>], iteration_bounds = array<i64: 1, 2, 1>, scalar_prefetch = 0 : i64, scratch_operands = 1 : i64, tpu.core_type = #tpu.core_type<tc>, window_params = [{transform_indices = @transform_0, window_bounds = array<i64: 1, 512, 128>}, {transform_indices = @transform_1, window_bounds = array<i64: 1, 128, 128>}, {transform_indices = @transform_2, window_bounds = array<i64: 1, 1, 128>}, {transform_indices = @transform_3, window_bounds = array<i64: 1, 1, 128>}, {transform_indices = @transform_4, window_bounds = array<i64: 1, 512, 128>}]} {
    %c0 = arith.constant 0 : index
    %c0_0 = arith.constant 0 : index
    %c0_1 = arith.constant 0 : index
    %0 = vector.load %arg3[%c0, %c0_0, %c0_1] : memref<1x512x128xbf16, #tpu.memory_space<vmem>>, vector<1x512x128xbf16>
    %1 = vector.shape_cast %0 : vector<1x512x128xbf16> to vector<512x128xbf16>
    %c0_2 = arith.constant 0 : index
    %c0_3 = arith.constant 0 : index
    %c0_4 = arith.constant 0 : index
    %2 = vector.load %arg4[%c0_2, %c0_3, %c0_4] : memref<1x128x128xbf16, #tpu.memory_space<vmem>>, vector<1x128x128xbf16>
    %3 = vector.shape_cast %2 : vector<1x128x128xbf16> to vector<128x128xbf16>
    %cst = arith.constant dense<0.000000e+00> : vector<512x128xf32>
    %4 = tpu.matmul %1, %3, %cst {dimension_numbers = #tpu.dot_dimension_numbers<[1], [0], [0], [1], [0, 0, 1, 1], [], []>} : vector<512x128xbf16>, vector<128x128xbf16>, vector<512x128xf32> -> vector<512x128xf32>
    %c0_i32 = arith.constant 0 : i32
    %5 = arith.cmpi eq, %arg1, %c0_i32 : i32
    %6 = arith.extui %5 : i1 to i32
    %c0_i32_5 = arith.constant 0 : i32
    %7 = arith.cmpi ne, %6, %c0_i32_5 : i32
    scf.if %7 {
      %c0_i32_7 = arith.constant 0 : i32
      %11 = arith.cmpi eq, %arg2, %c0_i32_7 : i32
      %12 = arith.extui %11 : i1 to i32
      %c0_i32_8 = arith.constant 0 : i32
      %13 = arith.cmpi ne, %12, %c0_i32_8 : i32
      scf.if %13 {
        %cst_18 = arith.constant 0.000000e+00 : f32
        %25 = vector.broadcast %cst_18 : f32 to vector<8x128xf32>
        %c0_19 = arith.constant 0 : index
        %c0_20 = arith.constant 0 : index
        %26 = vector.load %arg8[%c0_19, %c0_20] : memref<8x128xf32, #tpu.memory_space<vmem>>, vector<8x128xf32>
        tpu.vector_store %arg8[%c0_19, %c0_20], %25 {strides = array<i32>} : memref<8x128xf32, #tpu.memory_space<vmem>>, vector<8x128xf32>,
      } else {
      }
      %c0_9 = arith.constant 0 : index
      %c0_10 = arith.constant 0 : index
      %14 = vector.load %arg8[%c0_9, %c0_10] : memref<8x128xf32, #tpu.memory_space<vmem>>, vector<1x128xf32>
      %cst_11 = arith.constant dense<0.000000e+00> : vector<128xf32>
      %15 = vector.multi_reduction <add>, %4, %cst_11 [0] : vector<512x128xf32> to vector<128xf32>
      %16 = vector.shape_cast %15 : vector<128xf32> to vector<1x128xf32>
      %17 = arith.addf %14, %16 : vector<1x128xf32>
      %c0_12 = arith.constant 0 : index
      %c0_13 = arith.constant 0 : index
      %18 = vector.load %arg8[%c0_12, %c0_13] : memref<8x128xf32, #tpu.memory_space<vmem>>, vector<1x128xf32>
      tpu.vector_store %arg8[%c0_12, %c0_13], %17 {strides = array<i32>} : memref<8x128xf32, #tpu.memory_space<vmem>>, vector<1x128xf32>,
      %c1 = arith.constant 1 : index
      %c0_14 = arith.constant 0 : index
      %19 = vector.load %arg8[%c1, %c0_14] : memref<8x128xf32, #tpu.memory_space<vmem>>, vector<1x128xf32>
      %20 = arith.mulf %4, %4 : vector<512x128xf32>
      %cst_15 = arith.constant dense<0.000000e+00> : vector<128xf32>
      %21 = vector.multi_reduction <add>, %20, %cst_15 [0] : vector<512x128xf32> to vector<128xf32>
      %22 = vector.shape_cast %21 : vector<128xf32> to vector<1x128xf32>
      %23 = arith.addf %19, %22 : vector<1x128xf32>
      %c1_16 = arith.constant 1 : index
      %c0_17 = arith.constant 0 : index
      %24 = vector.load %arg8[%c1_16, %c0_17] : memref<8x128xf32, #tpu.memory_space<vmem>>, vector<1x128xf32>
      tpu.vector_store %arg8[%c1_16, %c0_17], %23 {strides = array<i32>} : memref<8x128xf32, #tpu.memory_space<vmem>>, vector<1x128xf32>,
    } else {
    }
    %c1_i32 = arith.constant 1 : i32
    %8 = arith.cmpi eq, %arg1, %c1_i32 : i32
    %9 = arith.extui %8 : i1 to i32
    %c0_i32_6 = arith.constant 0 : i32
    %10 = arith.cmpi ne, %9, %c0_i32_6 : i32
    scf.if %10 {
      %c0_7 = arith.constant 0 : index
      %c0_8 = arith.constant 0 : index
      %11 = vector.load %arg8[%c0_7, %c0_8] : memref<8x128xf32, #tpu.memory_space<vmem>>, vector<1x128xf32>
      %cst_9 = arith.constant 0.001953125 : f32
      %12 = vector.broadcast %cst_9 : f32 to vector<1x128xf32>
      %13 = arith.mulf %11, %12 : vector<1x128xf32>
      %c1 = arith.constant 1 : index
      %c0_10 = arith.constant 0 : index
      %14 = vector.load %arg8[%c1, %c0_10] : memref<8x128xf32, #tpu.memory_space<vmem>>, vector<1x128xf32>
      %cst_11 = arith.constant 0.001953125 : f32
      %15 = vector.broadcast %cst_11 : f32 to vector<1x128xf32>
      %16 = arith.mulf %14, %15 : vector<1x128xf32>
      %17 = arith.mulf %13, %13 : vector<1x128xf32>
      %18 = arith.subf %16, %17 : vector<1x128xf32>
      %cst_12 = arith.constant 9.99999974E-6 : f32
      %19 = vector.broadcast %cst_12 : f32 to vector<1x128xf32>
      %20 = arith.addf %18, %19 : vector<1x128xf32>
      %21 = math.rsqrt %20 : vector<1x128xf32>
      %c0_13 = arith.constant 0 : index
      %c0_14 = arith.constant 0 : index
      %c0_15 = arith.constant 0 : index
      %22 = vector.load %arg5[%c0_13, %c0_14, %c0_15] : memref<1x1x128xf32, #tpu.memory_space<vmem>>, vector<1x1x128xf32>
      %23 = vector.shape_cast %22 : vector<1x1x128xf32> to vector<1x128xf32>
      %24 = arith.mulf %23, %21 : vector<1x128xf32>
      %c0_16 = arith.constant 0 : index
      %c0_17 = arith.constant 0 : index
      %c0_18 = arith.constant 0 : index
      %25 = vector.load %arg6[%c0_16, %c0_17, %c0_18] : memref<1x1x128xf32, #tpu.memory_space<vmem>>, vector<1x1x128xf32>
      %26 = vector.shape_cast %25 : vector<1x1x128xf32> to vector<1x128xf32>
      %27 = arith.mulf %13, %24 : vector<1x128xf32>
      %28 = arith.subf %26, %27 : vector<1x128xf32>
      %29 = vector.broadcast %24 : vector<1x128xf32> to vector<512x128xf32>
      %30 = arith.mulf %4, %29 : vector<512x128xf32>
      %31 = vector.broadcast %28 : vector<1x128xf32> to vector<512x128xf32>
      %32 = arith.addf %30, %31 : vector<512x128xf32>
      %cst_19 = arith.constant 0.000000e+00 : f32
      %33 = vector.broadcast %cst_19 : f32 to vector<512x128xf32>
      %34 = arith.maximumf %32, %33 : vector<512x128xf32>
      %c0_20 = arith.constant 0 : index
      %c0_21 = arith.constant 0 : index
      %c0_22 = arith.constant 0 : index
      %35 = vector.load %arg7[%c0_20, %c0_21, %c0_22] : memref<1x512x128xf32, #tpu.memory_space<vmem>>, vector<1x512x128xf32>
      %36 = vector.shape_cast %35 : vector<1x512x128xf32> to vector<512x128xf32>
      %37 = vector.shape_cast %34 : vector<512x128xf32> to vector<1x512x128xf32>
      tpu.vector_store %arg7[%c0_20, %c0_21, %c0_22], %37 {strides = array<i32>} : memref<1x512x128xf32, #tpu.memory_space<vmem>>, vector<1x512x128xf32>,
    } else {
    }
    return
  }
  func.func @transform_0(%arg0: i32, %arg1: i32, %arg2: i32) -> (i32, i32, i32) {
    %c0_i32 = arith.constant 0 : i32
    %c0_i32_0 = arith.constant 0 : i32
    return %arg0, %arg2, %c0_i32 : i32, i32, i32
  }
  func.func @transform_1(%arg0: i32, %arg1: i32, %arg2: i32) -> (i32, i32, i32) {
    %c0_i32 = arith.constant 0 : i32
    %c0_i32_0 = arith.constant 0 : i32
    %c0_i32_1 = arith.constant 0 : i32
    return %arg0, %c0_i32, %c0_i32_0 : i32, i32, i32
  }
  func.func @transform_2(%arg0: i32, %arg1: i32, %arg2: i32) -> (i32, i32, i32) {
    %c0_i32 = arith.constant 0 : i32
    %c0_i32_0 = arith.constant 0 : i32
    %c0_i32_1 = arith.constant 0 : i32
    return %arg0, %c0_i32, %c0_i32_0 : i32, i32, i32
  }
  func.func @transform_3(%arg0: i32, %arg1: i32, %arg2: i32) -> (i32, i32, i32) {
    %c0_i32 = arith.constant 0 : i32
    %c0_i32_0 = arith.constant 0 : i32
    %c0_i32_1 = arith.constant 0 : i32
    return %arg0, %c0_i32, %c0_i32_0 : i32, i32, i32
  }
  func.func @transform_4(%arg0: i32, %arg1: i32, %arg2: i32) -> (i32, i32, i32) {
    %0 = arith.muli %arg2, %arg1 : i32
    %c0_i32 = arith.constant 0 : i32
    %c0_i32_0 = arith.constant 0 : i32
    return %arg0, %0, %c0_i32 : i32, i32, i32
  }
}

</mosaic_0001>

<llo_original>
// kernel: tpu_custom_call.1
$region0: #{tpu_custom_call.1}
  #allocation0 [shape = 'u32[]', space=smem, size = 0x4, offset = 0x4, fixed_abs, tag = 'smem constant byte address 0x4 - core index']
  #allocation1 [shape = 'u32[72,128]{1,0:T(1,128)}', space=vmem, size = 0x9000, scoped, tag = 'internal scratch']
  #allocation2 [shape = 'f32[8,128]{1,0:T(8,128)}', space=vmem, size = 0x1000, scoped, tag = 'scratch operand']
  %s0 = inlined_call_operand.hbm [shape: bf16[1,512,128], index: 0, kind: input, shape index: {}]
  %s1 = inlined_call_operand.hbm [shape: bf16[1,128,128], index: 1, kind: input, shape index: {}]
  %s2 = inlined_call_operand.vmem [shape: f32[1,1,128], index: 2, kind: input, shape index: {}]
  %s3 = inlined_call_operand.vmem [shape: f32[1,1,128], index: 3, kind: input, shape index: {}]
  %s4 = inlined_call_operand.hbm [shape: f32[1,512,128], index: 4, kind: output, shape index: {}]
  %s5 = sld [smem:[#allocation0]]
  $region69: #{tpu_custom_call.1} parent=0
    _
  %s7 = ssub.s32 1, %s5
  %s8 = scalar_select 0, %s7, %s5
  $region1: #{tpu_custom_call.1} parent=0
    #allocation3 [shape = 'u8[131072]{0}', space=vmem, size = 0x20000, scoped, tag = 'input window, operand 0, single buffered']
    #allocation4 [shape = 's32[2]{0}', space=sflag, size = 0x8, scoped, tag = 'scoped memory for tpu_custom_call.1']
    #allocation5 [shape = 's32[2]{0}', space=sflag, size = 0x8, scoped, tag = 'scoped memory for tpu_custom_call.1']
    #allocation6 [shape = 'u8[32768]{0}', space=vmem, size = 0x8000, scoped, tag = 'input window, operand 1, single buffered']
    #allocation7 [shape = 's32[1]{0}', space=sflag, size = 0x4, scoped, tag = 'scoped memory for tpu_custom_call.1']
    #allocation8 [shape = 'u8[524288]{0}', space=vmem, size = 0x80000, scoped, tag = 'output window, operand 0']
    %9 = vsyncpa [#allocation4], 0
    %10 = vsyncpa [#allocation7], 0
    %11 = vsyncpa [#allocation5], 0
    %s12 = scalar_lea.sflag [#allocation5], 1
    %13 = vsyncpa %s12, 0
    loop: start=0, step=1, limit=4
    $region2: #{tpu_custom_call.1} parent=1 // loop_pre_header
      _
    $region3: #{tpu_custom_call.1} parent=1 // loop_header
      %s15 = sphi 0, %s19
      %p16 = scmp.ge.s32.totalorder %s15, 4
      %s22 = sphi 0, %s41
      %s23 = sphi 0, %s37
      %s24 = sphi 0, %s33
      %s25 = sphi 0, %s22
      %s26 = sphi 0, %s23
      %s27 = sphi 0, %s24
      %s28 = sphi 0, %s25
      %s29 = sphi 0, %s26
      %s30 = sphi 0, %s27
      %s46 = sphi 0, %s48
      %s49 = sphi 0, %s46
      %s50 = sphi 0, %s49
      %s66 = sphi 0, %s50
      %s72 = sphi 0, %s74
      %s75 = sphi 0, %s72
      %s76 = sphi 0, %s75
      %s92 = sphi 0, %s76
      %s98 = sphi 0, %s100
      %s101 = sphi 0, %s98
      %s102 = sphi 0, %s101
      %s118 = sphi 0, %s102
      %s124 = sphi 0, %s126
      %s127 = sphi 0, %s124
      %s128 = sphi 0, %s127
      %s144 = sphi 0, %s128
      %s154 = sphi 0, %s156
      %s157 = sphi 0, %s154
      %s158 = sphi 0, %s157
      %s174 = sphi 0, %s158
    $region4: #{tpu_custom_call.1} parent=1 // loop_header_branch
      %18 = sbr.rel (%p16) target = $region8
    $region5: #{tpu_custom_call.1} parent=1 // loop_body
      %s20 = ssub.s32 %s15, 1
      %s21 = ssub.s32 %s15, 2
      %s31 = sadd.s32 1, %s24
      %p32 = scmp.ge.s32.totalorder %s31, 1
      %s33 = scalar_select %p32, 0, %s31
      %s34 = sadd.s32 1, %s23
      %s35 = scalar_select %p32, %s34, %s23
      %p36 = scmp.ge.s32.totalorder %s35, 2
      %s37 = scalar_select %p36, 0, %s35
      %s38 = sadd.s32 1, %s22
      %s39 = scalar_select %p36, %s38, %s22
      %p40 = scmp.ge.s32.totalorder %s39, 1
      %s41 = scalar_select %p40, 0, %s39
      %s42 = ssub.s32 %s22, %s41
      %s43 = ssub.s32 %s24, %s33
      %s44 = sor.u32 %s42, %s43
      %p45 = scmp.eq.s32.totalorder %s44, 0
      %s47 = sadd.s32 %s46, 1
      %s48 = scalar_select %p45, %s46, %s47
      %p51 = pneg %p45
      %p52 = scmp.eq.s32.totalorder %s15, 1
      %p53 = por %p51, %p52
      %p54 = scmp.ne.s32.totalorder %s46, %s49
      %p55 = scmp.eq.s32.totalorder %s15, 0
      %p56 = por %p54, %p55
      %p57 = scmp.ne.s32.totalorder %s46, %s49
      %p58 = scmp.eq.s32.totalorder %s20, 1
      %p59 = por %p57, %p58
      %p60 = scmp.ne.s32.totalorder %s49, %s50
      %p61 = scmp.eq.s32.totalorder %s20, 0
      %p62 = por %p60, %p61
      %p63 = scmp.ne.s32.totalorder %s49, %s50
      %p64 = scmp.eq.s32.totalorder %s21, 1
      %p65 = por %p63, %p64
      %p67 = scmp.ne.s32.totalorder %s50, %s66
      %p68 = scmp.eq.s32.totalorder %s21, 0
      %p69 = por %p67, %p68
      %s70 = ssub.s32 %s22, %s41
      %p71 = scmp.eq.s32.totalorder %s70, 0
      %s73 = sadd.s32 %s72, 1
      %s74 = scalar_select %p71, %s72, %s73
      %p77 = pneg %p71
      %p78 = scmp.eq.s32.totalorder %s15, 1
      %p79 = por %p77, %p78
      %p80 = scmp.ne.s32.totalorder %s72, %s75
      %p81 = scmp.eq.s32.totalorder %s15, 0
      %p82 = por %p80, %p81
      %p83 = scmp.ne.s32.totalorder %s72, %s75
      %p84 = scmp.eq.s32.totalorder %s20, 1
      %p85 = por %p83, %p84
      %p86 = scmp.ne.s32.totalorder %s75, %s76
      %p87 = scmp.eq.s32.totalorder %s20, 0
      %p88 = por %p86, %p87
      %p89 = scmp.ne.s32.totalorder %s75, %s76
      %p90 = scmp.eq.s32.totalorder %s21, 1
      %p91 = por %p89, %p90
      %p93 = scmp.ne.s32.totalorder %s76, %s92
      %p94 = scmp.eq.s32.totalorder %s21, 0
      %p95 = por %p93, %p94
      %s96 = ssub.s32 %s22, %s41
      %p97 = scmp.eq.s32.totalorder %s96, 0
      %s99 = sadd.s32 %s98, 1
      %s100 = scalar_select %p97, %s98, %s99
      %p103 = pneg %p97
      %p104 = scmp.eq.s32.totalorder %s15, 1
      %p105 = por %p103, %p104
      %p106 = scmp.ne.s32.totalorder %s98, %s101
      %p107 = scmp.eq.s32.totalorder %s15, 0
      %p108 = por %p106, %p107
      %p109 = scmp.ne.s32.totalorder %s98, %s101
      %p110 = scmp.eq.s32.totalorder %s20, 1
      %p111 = por %p109, %p110
      %p112 = scmp.ne.s32.totalorder %s101, %s102
      %p113 = scmp.eq.s32.totalorder %s20, 0
      %p114 = por %p112, %p113
      %p115 = scmp.ne.s32.totalorder %s101, %s102
      %p116 = scmp.eq.s32.totalorder %s21, 1
      %p117 = por %p115, %p116
      %p119 = scmp.ne.s32.totalorder %s102, %s118
      %p120 = scmp.eq.s32.totalorder %s21, 0
      %p121 = por %p119, %p120
      %s122 = ssub.s32 %s22, %s41
      %p123 = scmp.eq.s32.totalorder %s122, 0
      %s125 = sadd.s32 %s124, 1
      %s126 = scalar_select %p123, %s124, %s125
      %p129 = pneg %p123
      %p130 = scmp.eq.s32.totalorder %s15, 1
      %p131 = por %p129, %p130
      %p132 = scmp.ne.s32.totalorder %s124, %s127
      %p133 = scmp.eq.s32.totalorder %s15, 0
      %p134 = por %p132, %p133
      %p135 = scmp.ne.s32.totalorder %s124, %s127
      %p136 = scmp.eq.s32.totalorder %s20, 1
      %p137 = por %p135, %p136
      %p138 = scmp.ne.s32.totalorder %s127, %s128
      %p139 = scmp.eq.s32.totalorder %s20, 0
      %p140 = por %p138, %p139
      %p141 = scmp.ne.s32.totalorder %s127, %s128
      %p142 = scmp.eq.s32.totalorder %s21, 1
      %p143 = por %p141, %p142
      %p145 = scmp.ne.s32.totalorder %s128, %s144
      %p146 = scmp.eq.s32.totalorder %s21, 0
      %p147 = por %p145, %p146
      %s148 = smul.u32 %s24, %s23
      %s149 = smul.u32 %s33, %s37
      %s150 = ssub.s32 %s22, %s41
      %s151 = ssub.s32 %s148, %s149
      %s152 = sor.u32 %s150, %s151
      %p153 = scmp.eq.s32.totalorder %s152, 0
      %s155 = sadd.s32 %s154, 1
      %s156 = scalar_select %p153, %s154, %s155
      %p159 = pneg %p153
      %p160 = scmp.eq.s32.totalorder %s15, 1
      %p161 = por %p159, %p160
      %p162 = scmp.ne.s32.totalorder %s154, %s157
      %p163 = scmp.eq.s32.totalorder %s15, 0
      %p164 = por %p162, %p163
      %p165 = scmp.ne.s32.totalorder %s154, %s157
      %p166 = scmp.eq.s32.totalorder %s20, 1
      %p167 = por %p165, %p166
      %p168 = scmp.ne.s32.totalorder %s157, %s158
      %p169 = scmp.eq.s32.totalorder %s20, 0
      %p170 = por %p168, %p169
      %p171 = scmp.ne.s32.totalorder %s157, %s158
      %p172 = scmp.eq.s32.totalorder %s21, 1
      %p173 = por %p171, %p172
      %p175 = scmp.ne.s32.totalorder %s158, %s174
      %p176 = scmp.eq.s32.totalorder %s21, 0
      %p177 = por %p175, %p176
      %p178 = scmp.le.s32.totalorder 1, %s15
      %p179 = scmp.lt.s32.totalorder %s15, 3
      %p180 = pnand %p178, %p179
      %p181 = pneg %p180
      // Predicated region
      $region9: #{tpu_custom_call.1} parent=5 // pred_check
        _
      $region10: #{tpu_custom_call.1} parent=5 // pred_check_branch
        %183 = sbr.rel (%p180) target = $region12
      $region11: #{tpu_custom_call.1} parent=5 // pred_region
        %s184 = ssub.s32 %s15, 1
        // Predicated region
        $region13: #{tpu_custom_call.1} parent=11 // pred_check
          %p185 = pneg %p62
        $region14: #{tpu_custom_call.1} parent=11 // pred_check_branch
          %187 = sbr.rel (%p185) target = $region16
        $region15: #{tpu_custom_call.1} parent=11 // pred_region
          %s188 = smul.u32 64, %s27
          %190 = vsyncadd [#allocation4], 0
          %s191 = smul.addr %s25, 64
          %s192 = sadd.s32 %s188, %s191
          %s193 = smul.addr %s192, 4
          %s194 = scalar_lea.hbm %s0, %s193
          %s195 = sshll.u32 %s194, 4
          %s196 = int_to_ptr.hbm [resolvable:$true] %s195
          %s197 = sshll.u32 [#allocation3], 4
          %s198 = int_to_ptr.vmem [resolvable:$true] %s197
          %203 = dma.hbm_to_vmem [thread:$0]  %s196, 4096, %s198, [#allocation4], 64, 64, 4
        $region16: #{tpu_custom_call.1} parent=11 // pred_fallthru
          _
        // Predicated region
        $region17: #{tpu_custom_call.1} parent=11 // pred_check
          %p204 = pneg %p88
        $region18: #{tpu_custom_call.1} parent=11 // pred_check_branch
          %206 = sbr.rel (%p204) target = $region20
        $region19: #{tpu_custom_call.1} parent=11 // pred_region
          %208 = vsyncadd [#allocation7], 0
          %s209 = smul.addr %s25, 16
          %s210 = smul.addr %s209, 4
          %s211 = scalar_lea.hbm %s1, %s210
          %s212 = sshll.u32 %s211, 4
          %s213 = int_to_ptr.hbm [resolvable:$true] %s212
          %s214 = sshll.u32 [#allocation6], 4
          %s215 = int_to_ptr.vmem [resolvable:$true] %s214
          %220 = dma.hbm_to_vmem [thread:$0]  %s213, 1024, %s215, [#allocation7], 64, 64, 4
        $region20: #{tpu_custom_call.1} parent=11 // pred_fallthru
          _
        // Predicated region
        $region21: #{tpu_custom_call.1} parent=11 // pred_check
          %p221 = pneg %p114
        $region22: #{tpu_custom_call.1} parent=11 // pred_check_branch
          %223 = sbr.rel (%p221) target = $region24
        $region23: #{tpu_custom_call.1} parent=11 // pred_region
          %p224 = scmp.lt.s32.totalorder %s25, 0
          %s225 = scalar_select %p224, %s25, 0
          %s226 = scalar_lea.vmem %s2, %s225
        $region24: #{tpu_custom_call.1} parent=11 // pred_fallthru
          _
        // Predicated region
        $region25: #{tpu_custom_call.1} parent=11 // pred_check
          %p227 = pneg %p140
        $region26: #{tpu_custom_call.1} parent=11 // pred_check_branch
          %229 = sbr.rel (%p227) target = $region28
        $region27: #{tpu_custom_call.1} parent=11 // pred_region
          %p230 = scmp.lt.s32.totalorder %s25, 0
          %s231 = scalar_select %p230, %s25, 0
          %s232 = scalar_lea.vmem %s3, %s231
        $region28: #{tpu_custom_call.1} parent=11 // pred_fallthru
          _
      $region12: #{tpu_custom_call.1} parent=5 // pred_fallthru
        _
      %p233 = scmp.lt.s32.totalorder %s15, 2
      // Predicated region
      $region29: #{tpu_custom_call.1} parent=5 // pred_check
        %p234 = pneg %p233
      $region30: #{tpu_custom_call.1} parent=5 // pred_check_branch
        %236 = sbr.rel (%p234) target = $region32
      $region31: #{tpu_custom_call.1} parent=5 // pred_region
        _
      $region32: #{tpu_custom_call.1} parent=5 // pred_fallthru
        _
      %p237 = scmp.le.s32.totalorder 1, %s15
      %p238 = scmp.lt.s32.totalorder %s15, 3
      %p239 = pnand %p237, %p238
      %p240 = pneg %p239
      // Predicated region
      $region33: #{tpu_custom_call.1} parent=5 // pred_check
        _
      $region34: #{tpu_custom_call.1} parent=5 // pred_check_branch
        %242 = sbr.rel (%p239) target = $region36
      $region35: #{tpu_custom_call.1} parent=5 // pred_region
        %s243 = ssub.s32 %s15, 1
        // Predicated region
        $region37: #{tpu_custom_call.1} parent=35 // pred_check
          %p244 = pneg %p62
        $region38: #{tpu_custom_call.1} parent=35 // pred_check_branch
          %246 = sbr.rel (%p244) target = $region40
        $region39: #{tpu_custom_call.1} parent=35 // pred_region
          %248 = dma.done [#allocation4], 4096
        $region40: #{tpu_custom_call.1} parent=35 // pred_fallthru
          _
        // Predicated region
        $region41: #{tpu_custom_call.1} parent=35 // pred_check
          %p249 = pneg %p88
        $region42: #{tpu_custom_call.1} parent=35 // pred_check_branch
          %251 = sbr.rel (%p249) target = $region44
        $region43: #{tpu_custom_call.1} parent=35 // pred_region
          %253 = dma.done [#allocation7], 1024
        $region44: #{tpu_custom_call.1} parent=35 // pred_fallthru
          _
        %p254 = pneg %p62
        %p255 = pneg %p59
        %p256 = pneg %p88
        %p257 = pneg %p85
        %p258 = scmp.lt.s32.totalorder %s25, 0
        %s259 = scalar_select %p258, %s25, 0
        %s260 = scalar_lea.vmem %s2, %s259
        %p261 = pneg %p114
        %p262 = pneg %p111
        %p263 = scmp.lt.s32.totalorder %s25, 0
        %s264 = scalar_select %p263, %s25, 0
        %s265 = scalar_lea.vmem %s3, %s264
        %p266 = pneg %p140
        %p267 = pneg %p137
        %p268 = pneg %p170
        %p269 = pneg %p167
        %s270 = sand.u32 %s157, 1
        %s271 = scalar_lea.sflag [#allocation5], %s270
        %s272 = sand.u32 %s157, 1
        %s273 = smul.addr %s272, 512
        %s274 = scalar_lea.vmem [#allocation8], %s273
        %s275 = smul.u32 64, %s27
        %p276 = scmp.lt.s32.totalorder %s25, 0
        %s277 = scalar_select %p276, %s25, 0
        %s278 = scalar_lea.vmem %s2, %s277
        %p279 = scmp.lt.s32.totalorder %s25, 0
        %s280 = scalar_select %p279, %s25, 0
        %s281 = scalar_lea.vmem %s3, %s280
        %s282 = smul.u32 %s27, %s26
        %s283 = smul.u32 64, %s282
        %v284 = vld [vmem:[#allocation3] sm:$0xf]
        %v285 = vld [vmem:[#allocation3 + $0x4] sm:$0xf]
        %v286 = vld [vmem:[#allocation3 + $0x8] sm:$0xf]
        %v287 = vld [vmem:[#allocation3 + $0xc] sm:$0xf]
        %v288 = vld [vmem:[#allocation3 + $0x10] sm:$0xf]
        %v289 = vld [vmem:[#allocation3 + $0x14] sm:$0xf]
        %v290 = vld [vmem:[#allocation3 + $0x18] sm:$0xf]
        %v291 = vld [vmem:[#allocation3 + $0x1c] sm:$0xf]
        %v292 = vld [vmem:[#allocation3 + $0x20] sm:$0xf]
        %v293 = vld [vmem:[#allocation3 + $0x24] sm:$0xf]
        %v294 = vld [vmem:[#allocation3 + $0x28] sm:$0xf]
        %v295 = vld [vmem:[#allocation3 + $0x2c] sm:$0xf]
        %v296 = vld [vmem:[#allocation3 + $0x30] sm:$0xf]
        %v297 = vld [vmem:[#allocation3 + $0x34] sm:$0xf]
        %v298 = vld [vmem:[#allocation3 + $0x38] sm:$0xf]
        %v299 = vld [vmem:[#allocation3 + $0x3c] sm:$0xf]
        %v300 = vld [vmem:[#allocation3 + $0x40] sm:$0xf]
        %v301 = vld [vmem:[#allocation3 + $0x44] sm:$0xf]
        %v302 = vld [vmem:[#allocation3 + $0x48] sm:$0xf]
        %v303 = vld [vmem:[#allocation3 + $0x4c] sm:$0xf]
        %v304 = vld [vmem:[#allocation3 + $0x50] sm:$0xf]
        %v305 = vld [vmem:[#allocation3 + $0x54] sm:$0xf]
        %v306 = vld [vmem:[#allocation3 + $0x58] sm:$0xf]
        %v307 = vld [vmem:[#allocation3 + $0x5c] sm:$0xf]
        %v308 = vld [vmem:[#allocation3 + $0x60] sm:$0xf]
        %v309 = vld [vmem:[#allocation3 + $0x64] sm:$0xf]
        %v310 = vld [vmem:[#allocation3 + $0x68] sm:$0xf]
        %v311 = vld [vmem:[#allocation3 + $0x6c] sm:$0xf]
        %v312 = vld [vmem:[#allocation3 + $0x70] sm:$0xf]
        %v313 = vld [vmem:[#allocation3 + $0x74] sm:$0xf]
        %v314 = vld [vmem:[#allocation3 + $0x78] sm:$0xf]
        %v315 = vld [vmem:[#allocation3 + $0x7c] sm:$0xf]
        %v316 = vld [vmem:[#allocation3 + $0x80] sm:$0xf]
        %v317 = vld [vmem:[#allocation3 + $0x84] sm:$0xf]
        %v318 = vld [vmem:[#allocation3 + $0x88] sm:$0xf]
        %v319 = vld [vmem:[#allocation3 + $0x8c] sm:$0xf]
        %v320 = vld [vmem:[#allocation3 + $0x90] sm:$0xf]
        %v321 = vld [vmem:[#allocation3 + $0x94] sm:$0xf]
        %v322 = vld [vmem:[#allocation3 + $0x98] sm:$0xf]
        %v323 = vld [vmem:[#allocation3 + $0x9c] sm:$0xf]
        %v324 = vld [vmem:[#allocation3 + $0xa0] sm:$0xf]
        %v325 = vld [vmem:[#allocation3 + $0xa4] sm:$0xf]
        %v326 = vld [vmem:[#allocation3 + $0xa8] sm:$0xf]
        %v327 = vld [vmem:[#allocation3 + $0xac] sm:$0xf]
        %v328 = vld [vmem:[#allocation3 + $0xb0] sm:$0xf]
        %v329 = vld [vmem:[#allocation3 + $0xb4] sm:$0xf]
        %v330 = vld [vmem:[#allocation3 + $0xb8] sm:$0xf]
        %v331 = vld [vmem:[#allocation3 + $0xbc] sm:$0xf]
        %v332 = vld [vmem:[#allocation3 + $0xc0] sm:$0xf]
        %v333 = vld [vmem:[#allocation3 + $0xc4] sm:$0xf]
        %v334 = vld [vmem:[#allocation3 + $0xc8] sm:$0xf]
        %v335 = vld [vmem:[#allocation3 + $0xcc] sm:$0xf]
        %v336 = vld [vmem:[#allocation3 + $0xd0] sm:$0xf]
        %v337 = vld [vmem:[#allocation3 + $0xd4] sm:$0xf]
        %v338 = vld [vmem:[#allocation3 + $0xd8] sm:$0xf]
        %v339 = vld [vmem:[#allocation3 + $0xdc] sm:$0xf]
        %v340 = vld [vmem:[#allocation3 + $0xe0] sm:$0xf]
        %v341 = vld [vmem:[#allocation3 + $0xe4] sm:$0xf]
        %v342 = vld [vmem:[#allocation3 + $0xe8] sm:$0xf]
        %v343 = vld [vmem:[#allocation3 + $0xec] sm:$0xf]
        %v344 = vld [vmem:[#allocation3 + $0xf0] sm:$0xf]
        %v345 = vld [vmem:[#allocation3 + $0xf4] sm:$0xf]
        %v346 = vld [vmem:[#allocation3 + $0xf8] sm:$0xf]
        %v347 = vld [vmem:[#allocation3 + $0xfc] sm:$0xf]
        %v348 = vld [vmem:[#allocation6] sm:$0xf]
        %v349 = vld [vmem:[#allocation6 + $0x4] sm:$0xf]
        %v350 = vld [vmem:[#allocation6 + $0x8] sm:$0xf]
        %v351 = vld [vmem:[#allocation6 + $0xc] sm:$0xf]
        %v352 = vld [vmem:[#allocation6 + $0x10] sm:$0xf]
        %v353 = vld [vmem:[#allocation6 + $0x14] sm:$0xf]
        %v354 = vld [vmem:[#allocation6 + $0x18] sm:$0xf]
        %v355 = vld [vmem:[#allocation6 + $0x1c] sm:$0xf]
        %v356 = vld [vmem:[#allocation6 + $0x20] sm:$0xf]
        %v357 = vld [vmem:[#allocation6 + $0x24] sm:$0xf]
        %v358 = vld [vmem:[#allocation6 + $0x28] sm:$0xf]
        %v359 = vld [vmem:[#allocation6 + $0x2c] sm:$0xf]
        %v360 = vld [vmem:[#allocation6 + $0x30] sm:$0xf]
        %v361 = vld [vmem:[#allocation6 + $0x34] sm:$0xf]
        %v362 = vld [vmem:[#allocation6 + $0x38] sm:$0xf]
        %v363 = vld [vmem:[#allocation6 + $0x3c] sm:$0xf]
        %v428 = vunpack.c.l.b16 %v284
        %v429 = vunpack.c.l.b16 %v285
        %v430 = vunpack.c.l.b16 %v286
        %v431 = vunpack.c.l.b16 %v287
        %v432 = vunpack.c.l.b16 %v288
        %v433 = vunpack.c.l.b16 %v289
        %v434 = vunpack.c.l.b16 %v290
        %v435 = vunpack.c.l.b16 %v291
        %v436 = vunpack.c.l.b16 %v292
        %v437 = vunpack.c.l.b16 %v293
        %v438 = vunpack.c.l.b16 %v294
        %v439 = vunpack.c.l.b16 %v295
        %v440 = vunpack.c.l.b16 %v296
        %v441 = vunpack.c.l.b16 %v297
        %v442 = vunpack.c.l.b16 %v298
        %v443 = vunpack.c.l.b16 %v299
        %v444 = vunpack.c.l.b16 %v300
        %v445 = vunpack.c.l.b16 %v301
        %v446 = vunpack.c.l.b16 %v302
        %v447 = vunpack.c.l.b16 %v303
        %v448 = vunpack.c.l.b16 %v304
        %v449 = vunpack.c.l.b16 %v305
        %v450 = vunpack.c.l.b16 %v306
        %v451 = vunpack.c.l.b16 %v307
        %v452 = vunpack.c.l.b16 %v308
        %v453 = vunpack.c.l.b16 %v309
        %v454 = vunpack.c.l.b16 %v310
        %v455 = vunpack.c.l.b16 %v311
        %v456 = vunpack.c.l.b16 %v312
        %v457 = vunpack.c.l.b16 %v313
        %v458 = vunpack.c.l.b16 %v314
        %v459 = vunpack.c.l.b16 %v315
        %v460 = vunpack.c.l.b16 %v316
        %v461 = vunpack.c.l.b16 %v317
        %v462 = vunpack.c.l.b16 %v318
        %v463 = vunpack.c.l.b16 %v319
        %v464 = vunpack.c.l.b16 %v320
        %v465 = vunpack.c.l.b16 %v321
        %v466 = vunpack.c.l.b16 %v322
        %v467 = vunpack.c.l.b16 %v323
        %v468 = vunpack.c.l.b16 %v324
        %v469 = vunpack.c.l.b16 %v325
        %v470 = vunpack.c.l.b16 %v326
        %v471 = vunpack.c.l.b16 %v327
        %v472 = vunpack.c.l.b16 %v328
        %v473 = vunpack.c.l.b16 %v329
        %v474 = vunpack.c.l.b16 %v330
        %v475 = vunpack.c.l.b16 %v331
        %v476 = vunpack.c.l.b16 %v332
        %v477 = vunpack.c.l.b16 %v333
        %v478 = vunpack.c.l.b16 %v334
        %v479 = vunpack.c.l.b16 %v335
        %v480 = vunpack.c.l.b16 %v336
        %v481 = vunpack.c.l.b16 %v337
        %v482 = vunpack.c.l.b16 %v338
        %v483 = vunpack.c.l.b16 %v339
        %v484 = vunpack.c.l.b16 %v340
        %v485 = vunpack.c.l.b16 %v341
        %v486 = vunpack.c.l.b16 %v342
        %v487 = vunpack.c.l.b16 %v343
        %v488 = vunpack.c.l.b16 %v344
        %v489 = vunpack.c.l.b16 %v345
        %v490 = vunpack.c.l.b16 %v346
        %v491 = vunpack.c.l.b16 %v347
        %v492 = vpack.c.b16 %v429, %v428
        %v493 = vpack.c.b16 %v431, %v430
        %v494 = vpack.c.b16 %v433, %v432
        %v495 = vpack.c.b16 %v435, %v434
        %v496 = vpack.c.b16 %v437, %v436
        %v497 = vpack.c.b16 %v439, %v438
        %v498 = vpack.c.b16 %v441, %v440
        %v499 = vpack.c.b16 %v443, %v442
        %v500 = vpack.c.b16 %v445, %v444
        %v501 = vpack.c.b16 %v447, %v446
        %v502 = vpack.c.b16 %v449, %v448
        %v503 = vpack.c.b16 %v451, %v450
        %v504 = vpack.c.b16 %v453, %v452
        %v505 = vpack.c.b16 %v455, %v454
        %v506 = vpack.c.b16 %v457, %v456
        %v507 = vpack.c.b16 %v459, %v458
        %v508 = vpack.c.b16 %v461, %v460
        %v509 = vpack.c.b16 %v463, %v462
        %v510 = vpack.c.b16 %v465, %v464
        %v511 = vpack.c.b16 %v467, %v466
        %v512 = vpack.c.b16 %v469, %v468
        %v513 = vpack.c.b16 %v471, %v470
        %v514 = vpack.c.b16 %v473, %v472
        %v515 = vpack.c.b16 %v475, %v474
        %v516 = vpack.c.b16 %v477, %v476
        %v517 = vpack.c.b16 %v479, %v478
        %v518 = vpack.c.b16 %v481, %v480
        %v519 = vpack.c.b16 %v483, %v482
        %v520 = vpack.c.b16 %v485, %v484
        %v521 = vpack.c.b16 %v487, %v486
        %v522 = vpack.c.b16 %v489, %v488
        %v523 = vpack.c.b16 %v491, %v490
        %v572 = vunpack.c.l.b16 %v348
        %v573 = vunpack.c.l.b16 %v349
        %v574 = vunpack.c.l.b16 %v350
        %v575 = vunpack.c.l.b16 %v351
        %v576 = vunpack.c.l.b16 %v352
        %v577 = vunpack.c.l.b16 %v353
        %v578 = vunpack.c.l.b16 %v354
        %v579 = vunpack.c.l.b16 %v355
        %v580 = vunpack.c.l.b16 %v356
        %v581 = vunpack.c.l.b16 %v357
        %v582 = vunpack.c.l.b16 %v358
        %v583 = vunpack.c.l.b16 %v359
        %v584 = vunpack.c.l.b16 %v360
        %v585 = vunpack.c.l.b16 %v361
        %v586 = vunpack.c.l.b16 %v362
        %v587 = vunpack.c.l.b16 %v363
        %v588 = vpack.c.b16 %v573, %v572
        %v589 = vpack.c.b16 %v575, %v574
        %v590 = vpack.c.b16 %v577, %v576
        %v591 = vpack.c.b16 %v579, %v578
        %v592 = vpack.c.b16 %v581, %v580
        %v593 = vpack.c.b16 %v583, %v582
        %v594 = vpack.c.b16 %v585, %v584
        %v595 = vpack.c.b16 %v587, %v586
        %604 = vmatpush.bf16.msra.mxu0 %v595
        %605 = vmatpush.bf16.msra.mxu0 %v594
        %606 = vmatpush.bf16.msra.mxu0 %v593
        %607 = vmatpush.bf16.msra.mxu0 %v592
        %608 = vmatpush.bf16.msra.mxu0 %v591
        %609 = vmatpush.bf16.msra.mxu0 %v590
        %610 = vmatpush.bf16.msra.mxu0 %v589
        %611 = vmatpush.bf16.msra.mxu0 %v588
        %612 = vmatmul.bf16.gmra.mxu0 %v492
        %v613 = vpop.f32.mrf.mxu0
        %v614 = vadd.f32 0.0, %v613
        %v615 = vpop.f32.mrf.mxu0
        %v616 = vadd.f32 0.0, %v615
        %617 = vmatmul.bf16.gmra.mxu0 %v493
        %v618 = vpop.f32.mrf.mxu0
        %v619 = vadd.f32 0.0, %v618
        %v620 = vpop.f32.mrf.mxu0
        %v621 = vadd.f32 0.0, %v620
        %622 = vmatmul.bf16.gmra.mxu0 %v494
        %v623 = vpop.f32.mrf.mxu0
        %v624 = vadd.f32 0.0, %v623
        %v625 = vpop.f32.mrf.mxu0
        %v626 = vadd.f32 0.0, %v625
        %627 = vmatmul.bf16.gmra.mxu0 %v495
        %v628 = vpop.f32.mrf.mxu0
        %v629 = vadd.f32 0.0, %v628
        %v630 = vpop.f32.mrf.mxu0
        %v631 = vadd.f32 0.0, %v630
        %632 = vmatmul.bf16.gmra.mxu0 %v496
        %v633 = vpop.f32.mrf.mxu0
        %v634 = vadd.f32 0.0, %v633
        %v635 = vpop.f32.mrf.mxu0
        %v636 = vadd.f32 0.0, %v635
        %637 = vmatmul.bf16.gmra.mxu0 %v497
        %v638 = vpop.f32.mrf.mxu0
        %v639 = vadd.f32 0.0, %v638
        %v640 = vpop.f32.mrf.mxu0
        %v641 = vadd.f32 0.0, %v640
        %642 = vmatmul.bf16.gmra.mxu0 %v498
        %v643 = vpop.f32.mrf.mxu0
        %v644 = vadd.f32 0.0, %v643
        %v645 = vpop.f32.mrf.mxu0
        %v646 = vadd.f32 0.0, %v645
        %647 = vmatmul.bf16.gmra.mxu0 %v499
        %v648 = vpop.f32.mrf.mxu0
        %v649 = vadd.f32 0.0, %v648
        %v650 = vpop.f32.mrf.mxu0
        %v651 = vadd.f32 0.0, %v650
        %652 = vmatmul.bf16.gmra.mxu0 %v500
        %v653 = vpop.f32.mrf.mxu0
        %v654 = vadd.f32 0.0, %v653
        %v655 = vpop.f32.mrf.mxu0
        %v656 = vadd.f32 0.0, %v655
        %657 = vmatmul.bf16.gmra.mxu0 %v501
        %v658 = vpop.f32.mrf.mxu0
        %v659 = vadd.f32 0.0, %v658
        %v660 = vpop.f32.mrf.mxu0
        %v661 = vadd.f32 0.0, %v660
        %662 = vmatmul.bf16.gmra.mxu0 %v502
        %v663 = vpop.f32.mrf.mxu0
        %v664 = vadd.f32 0.0, %v663
        %v665 = vpop.f32.mrf.mxu0
        %v666 = vadd.f32 0.0, %v665
        %667 = vmatmul.bf16.gmra.mxu0 %v503
        %v668 = vpop.f32.mrf.mxu0
        %v669 = vadd.f32 0.0, %v668
        %v670 = vpop.f32.mrf.mxu0
        %v671 = vadd.f32 0.0, %v670
        %672 = vmatmul.bf16.gmra.mxu0 %v504
        %v673 = vpop.f32.mrf.mxu0
        %v674 = vadd.f32 0.0, %v673
        %v675 = vpop.f32.mrf.mxu0
        %v676 = vadd.f32 0.0, %v675
        %677 = vmatmul.bf16.gmra.mxu0 %v505
        %v678 = vpop.f32.mrf.mxu0
        %v679 = vadd.f32 0.0, %v678
        %v680 = vpop.f32.mrf.mxu0
        %v681 = vadd.f32 0.0, %v680
        %682 = vmatmul.bf16.gmra.mxu0 %v506
        %v683 = vpop.f32.mrf.mxu0
        %v684 = vadd.f32 0.0, %v683
        %v685 = vpop.f32.mrf.mxu0
        %v686 = vadd.f32 0.0, %v685
        %687 = vmatmul.bf16.gmra.mxu0 %v507
        %v688 = vpop.f32.mrf.mxu0
        %v689 = vadd.f32 0.0, %v688
        %v690 = vpop.f32.mrf.mxu0
        %v691 = vadd.f32 0.0, %v690
        %692 = vmatmul.bf16.gmra.mxu0 %v508
        %v693 = vpop.f32.mrf.mxu0
        %v694 = vadd.f32 0.0, %v693
        %v695 = vpop.f32.mrf.mxu0
        %v696 = vadd.f32 0.0, %v695
        %697 = vmatmul.bf16.gmra.mxu0 %v509
        %v698 = vpop.f32.mrf.mxu0
        %v699 = vadd.f32 0.0, %v698
        %v700 = vpop.f32.mrf.mxu0
        %v701 = vadd.f32 0.0, %v700
        %702 = vmatmul.bf16.gmra.mxu0 %v510
        %v703 = vpop.f32.mrf.mxu0
        %v704 = vadd.f32 0.0, %v703
        %v705 = vpop.f32.mrf.mxu0
        %v706 = vadd.f32 0.0, %v705
        %707 = vmatmul.bf16.gmra.mxu0 %v511
        %v708 = vpop.f32.mrf.mxu0
        %v709 = vadd.f32 0.0, %v708
        %v710 = vpop.f32.mrf.mxu0
        %v711 = vadd.f32 0.0, %v710
        %712 = vmatmul.bf16.gmra.mxu0 %v512
        %v713 = vpop.f32.mrf.mxu0
        %v714 = vadd.f32 0.0, %v713
        %v715 = vpop.f32.mrf.mxu0
        %v716 = vadd.f32 0.0, %v715
        %717 = vmatmul.bf16.gmra.mxu0 %v513
        %v718 = vpop.f32.mrf.mxu0
        %v719 = vadd.f32 0.0, %v718
        %v720 = vpop.f32.mrf.mxu0
        %v721 = vadd.f32 0.0, %v720
        %722 = vmatmul.bf16.gmra.mxu0 %v514
        %v723 = vpop.f32.mrf.mxu0
        %v724 = vadd.f32 0.0, %v723
        %v725 = vpop.f32.mrf.mxu0
        %v726 = vadd.f32 0.0, %v725
        %727 = vmatmul.bf16.gmra.mxu0 %v515
        %v728 = vpop.f32.mrf.mxu0
        %v729 = vadd.f32 0.0, %v728
        %v730 = vpop.f32.mrf.mxu0
        %v731 = vadd.f32 0.0, %v730
        %732 = vmatmul.bf16.gmra.mxu0 %v516
        %v733 = vpop.f32.mrf.mxu0
        %v734 = vadd.f32 0.0, %v733
        %v735 = vpop.f32.mrf.mxu0
        %v736 = vadd.f32 0.0, %v735
        %737 = vmatmul.bf16.gmra.mxu0 %v517
        %v738 = vpop.f32.mrf.mxu0
        %v739 = vadd.f32 0.0, %v738
        %v740 = vpop.f32.mrf.mxu0
        %v741 = vadd.f32 0.0, %v740
        %742 = vmatmul.bf16.gmra.mxu0 %v518
        %v743 = vpop.f32.mrf.mxu0
        %v744 = vadd.f32 0.0, %v743
        %v745 = vpop.f32.mrf.mxu0
        %v746 = vadd.f32 0.0, %v745
        %747 = vmatmul.bf16.gmra.mxu0 %v519
        %v748 = vpop.f32.mrf.mxu0
        %v749 = vadd.f32 0.0, %v748
        %v750 = vpop.f32.mrf.mxu0
        %v751 = vadd.f32 0.0, %v750
        %752 = vmatmul.bf16.gmra.mxu0 %v520
        %v753 = vpop.f32.mrf.mxu0
        %v754 = vadd.f32 0.0, %v753
        %v755 = vpop.f32.mrf.mxu0
        %v756 = vadd.f32 0.0, %v755
        %757 = vmatmul.bf16.gmra.mxu0 %v521
        %v758 = vpop.f32.mrf.mxu0
        %v759 = vadd.f32 0.0, %v758
        %v760 = vpop.f32.mrf.mxu0
        %v761 = vadd.f32 0.0, %v760
        %762 = vmatmul.bf16.gmra.mxu0 %v522
        %v763 = vpop.f32.mrf.mxu0
        %v764 = vadd.f32 0.0, %v763
        %v765 = vpop.f32.mrf.mxu0
        %v766 = vadd.f32 0.0, %v765
        %767 = vmatmul.bf16.gmra.mxu0 %v523
        %v768 = vpop.f32.mrf.mxu0
        %v769 = vadd.f32 0.0, %v768
        %v770 = vpop.f32.mrf.mxu0
        %v771 = vadd.f32 0.0, %v770
        %772 = vdwg.mxu0
        %p773 = scmp.eq.s32.totalorder %s26, 0
        // Predicated region
        $region45: #{tpu_custom_call.1} parent=35 // pred_check
          %p774 = pneg %p773
        $region46: #{tpu_custom_call.1} parent=35 // pred_check_branch
          %776 = sbr.rel (%p774) target = $region48
        $region47: #{tpu_custom_call.1} parent=35 // pred_region
          %p777 = scmp.eq.s32.totalorder %s27, 0
          // Predicated region
          $region49: #{tpu_custom_call.1} parent=47 // pred_check
            %p778 = pneg %p777
          $region50: #{tpu_custom_call.1} parent=47 // pred_check_branch
            %780 = sbr.rel (%p778) target = $region52
          $region51: #{tpu_custom_call.1} parent=47 // pred_region
            %781 = vst [vmem:[#allocation2] sm:$0xff] 0.0
          $region52: #{tpu_custom_call.1} parent=47 // pred_fallthru
            _
          %v782 = vld [vmem:[#allocation2] sm:$0x1]
          %v783 = vadd.f32 %v614, %v616
          %v784 = vadd.f32 %v783, %v619
          %v785 = vadd.f32 %v784, %v621
          %v786 = vadd.f32 %v785, %v624
          %v787 = vadd.f32 %v786, %v626
          %v788 = vadd.f32 %v787, %v629
          %v789 = vadd.f32 %v788, %v631
          %v790 = vadd.f32 %v789, %v634
          %v791 = vadd.f32 %v790, %v636
          %v792 = vadd.f32 %v791, %v639
          %v793 = vadd.f32 %v792, %v641
          %v794 = vadd.f32 %v793, %v644
          %v795 = vadd.f32 %v794, %v646
          %v796 = vadd.f32 %v795, %v649
          %v797 = vadd.f32 %v796, %v651
          %v798 = vadd.f32 %v797, %v654
          %v799 = vadd.f32 %v798, %v656
          %v800 = vadd.f32 %v799, %v659
          %v801 = vadd.f32 %v800, %v661
          %v802 = vadd.f32 %v801, %v664
          %v803 = vadd.f32 %v802, %v666
          %v804 = vadd.f32 %v803, %v669
          %v805 = vadd.f32 %v804, %v671
          %v806 = vadd.f32 %v805, %v674
          %v807 = vadd.f32 %v806, %v676
          %v808 = vadd.f32 %v807, %v679
          %v809 = vadd.f32 %v808, %v681
          %v810 = vadd.f32 %v809, %v684
          %v811 = vadd.f32 %v810, %v686
          %v812 = vadd.f32 %v811, %v689
          %v813 = vadd.f32 %v812, %v691
          %v814 = vadd.f32 %v813, %v694
          %v815 = vadd.f32 %v814, %v696
          %v816 = vadd.f32 %v815, %v699
          %v817 = vadd.f32 %v816, %v701
          %v818 = vadd.f32 %v817, %v704
          %v819 = vadd.f32 %v818, %v706
          %v820 = vadd.f32 %v819, %v709
          %v821 = vadd.f32 %v820, %v711
          %v822 = vadd.f32 %v821, %v714
          %v823 = vadd.f32 %v822, %v716
          %v824 = vadd.f32 %v823, %v719
          %v825 = vadd.f32 %v824, %v721
          %v826 = vadd.f32 %v825, %v724
          %v827 = vadd.f32 %v826, %v726
          %v828 = vadd.f32 %v827, %v729
          %v829 = vadd.f32 %v828, %v731
          %v830 = vadd.f32 %v829, %v734
          %v831 = vadd.f32 %v830, %v736
          %v832 = vadd.f32 %v831, %v739
          %v833 = vadd.f32 %v832, %v741
          %v834 = vadd.f32 %v833, %v744
          %v835 = vadd.f32 %v834, %v746
          %v836 = vadd.f32 %v835, %v749
          %v837 = vadd.f32 %v836, %v751
          %v838 = vadd.f32 %v837, %v754
          %v839 = vadd.f32 %v838, %v756
          %v840 = vadd.f32 %v839, %v759
          %v841 = vadd.f32 %v840, %v761
          %v842 = vadd.f32 %v841, %v764
          %v843 = vadd.f32 %v842, %v766
          %v844 = vadd.f32 %v843, %v769
          %v845 = vadd.f32 %v844, %v771
          %v846 = vrot.slane %v845, 4
          %v847 = vadd.f32 %v845, %v846
          %v848 = vrot.slane %v847, 2
          %v849 = vadd.f32 %v847, %v848
          %v850 = vrot.slane %v849, 1
          %v851 = vadd.f32 %v849, %v850
          %v852 = vadd.f32 %v782, %v851
          %853 = vst [vmem:[#allocation2] sm:$0x1] %v852
          %v854 = vld [vmem:[#allocation2 + $0x1] sm:$0x1]
          %v855 = vmul.f32 %v614, %v614
          %v856 = vmul.f32 %v616, %v616
          %v857 = vmul.f32 %v619, %v619
          %v858 = vmul.f32 %v621, %v621
          %v859 = vmul.f32 %v624, %v624
          %v860 = vmul.f32 %v626, %v626
          %v861 = vmul.f32 %v629, %v629
          %v862 = vmul.f32 %v631, %v631
          %v863 = vmul.f32 %v634, %v634
          %v864 = vmul.f32 %v636, %v636
          %v865 = vmul.f32 %v639, %v639
          %v866 = vmul.f32 %v641, %v641
          %v867 = vmul.f32 %v644, %v644
          %v868 = vmul.f32 %v646, %v646
          %v869 = vmul.f32 %v649, %v649
          %v870 = vmul.f32 %v651, %v651
          %v871 = vmul.f32 %v654, %v654
          %v872 = vmul.f32 %v656, %v656
          %v873 = vmul.f32 %v659, %v659
          %v874 = vmul.f32 %v661, %v661
          %v875 = vmul.f32 %v664, %v664
          %v876 = vmul.f32 %v666, %v666
          %v877 = vmul.f32 %v669, %v669
          %v878 = vmul.f32 %v671, %v671
          %v879 = vmul.f32 %v674, %v674
          %v880 = vmul.f32 %v676, %v676
          %v881 = vmul.f32 %v679, %v679
          %v882 = vmul.f32 %v681, %v681
          %v883 = vmul.f32 %v684, %v684
          %v884 = vmul.f32 %v686, %v686
          %v885 = vmul.f32 %v689, %v689
          %v886 = vmul.f32 %v691, %v691
          %v887 = vmul.f32 %v694, %v694
          %v888 = vmul.f32 %v696, %v696
          %v889 = vmul.f32 %v699, %v699
          %v890 = vmul.f32 %v701, %v701
          %v891 = vmul.f32 %v704, %v704
          %v892 = vmul.f32 %v706, %v706
          %v893 = vmul.f32 %v709, %v709
          %v894 = vmul.f32 %v711, %v711
          %v895 = vmul.f32 %v714, %v714
          %v896 = vmul.f32 %v716, %v716
          %v897 = vmul.f32 %v719, %v719
          %v898 = vmul.f32 %v721, %v721
          %v899 = vmul.f32 %v724, %v724
          %v900 = vmul.f32 %v726, %v726
          %v901 = vmul.f32 %v729, %v729
          %v902 = vmul.f32 %v731, %v731
          %v903 = vmul.f32 %v734, %v734
          %v904 = vmul.f32 %v736, %v736
          %v905 = vmul.f32 %v739, %v739
          %v906 = vmul.f32 %v741, %v741
          %v907 = vmul.f32 %v744, %v744
          %v908 = vmul.f32 %v746, %v746
          %v909 = vmul.f32 %v749, %v749
          %v910 = vmul.f32 %v751, %v751
          %v911 = vmul.f32 %v754, %v754
          %v912 = vmul.f32 %v756, %v756
          %v913 = vmul.f32 %v759, %v759
          %v914 = vmul.f32 %v761, %v761
          %v915 = vmul.f32 %v764, %v764
          %v916 = vmul.f32 %v766, %v766
          %v917 = vmul.f32 %v769, %v769
          %v918 = vmul.f32 %v771, %v771
          %v919 = vadd.f32 %v855, %v856
          %v920 = vadd.f32 %v919, %v857
          %v921 = vadd.f32 %v920, %v858
          %v922 = vadd.f32 %v921, %v859
          %v923 = vadd.f32 %v922, %v860
          %v924 = vadd.f32 %v923, %v861
          %v925 = vadd.f32 %v924, %v862
          %v926 = vadd.f32 %v925, %v863
          %v927 = vadd.f32 %v926, %v864
          %v928 = vadd.f32 %v927, %v865
          %v929 = vadd.f32 %v928, %v866
          %v930 = vadd.f32 %v929, %v867
          %v931 = vadd.f32 %v930, %v868
          %v932 = vadd.f32 %v931, %v869
          %v933 = vadd.f32 %v932, %v870
          %v934 = vadd.f32 %v933, %v871
          %v935 = vadd.f32 %v934, %v872
          %v936 = vadd.f32 %v935, %v873
          %v937 = vadd.f32 %v936, %v874
          %v938 = vadd.f32 %v937, %v875
          %v939 = vadd.f32 %v938, %v876
          %v940 = vadd.f32 %v939, %v877
          %v941 = vadd.f32 %v940, %v878
          %v942 = vadd.f32 %v941, %v879
          %v943 = vadd.f32 %v942, %v880
          %v944 = vadd.f32 %v943, %v881
          %v945 = vadd.f32 %v944, %v882
          %v946 = vadd.f32 %v945, %v883
          %v947 = vadd.f32 %v946, %v884
          %v948 = vadd.f32 %v947, %v885
          %v949 = vadd.f32 %v948, %v886
          %v950 = vadd.f32 %v949, %v887
          %v951 = vadd.f32 %v950, %v888
          %v952 = vadd.f32 %v951, %v889
          %v953 = vadd.f32 %v952, %v890
          %v954 = vadd.f32 %v953, %v891
          %v955 = vadd.f32 %v954, %v892
          %v956 = vadd.f32 %v955, %v893
          %v957 = vadd.f32 %v956, %v894
          %v958 = vadd.f32 %v957, %v895
          %v959 = vadd.f32 %v958, %v896
          %v960 = vadd.f32 %v959, %v897
          %v961 = vadd.f32 %v960, %v898
          %v962 = vadd.f32 %v961, %v899
          %v963 = vadd.f32 %v962, %v900
          %v964 = vadd.f32 %v963, %v901
          %v965 = vadd.f32 %v964, %v902
          %v966 = vadd.f32 %v965, %v903
          %v967 = vadd.f32 %v966, %v904
          %v968 = vadd.f32 %v967, %v905
          %v969 = vadd.f32 %v968, %v906
          %v970 = vadd.f32 %v969, %v907
          %v971 = vadd.f32 %v970, %v908
          %v972 = vadd.f32 %v971, %v909
          %v973 = vadd.f32 %v972, %v910
          %v974 = vadd.f32 %v973, %v911
          %v975 = vadd.f32 %v974, %v912
          %v976 = vadd.f32 %v975, %v913
          %v977 = vadd.f32 %v976, %v914
          %v978 = vadd.f32 %v977, %v915
          %v979 = vadd.f32 %v978, %v916
          %v980 = vadd.f32 %v979, %v917
          %v981 = vadd.f32 %v980, %v918
          %v982 = vrot.slane %v981, 4
          %v983 = vadd.f32 %v981, %v982
          %v984 = vrot.slane %v983, 2
          %v985 = vadd.f32 %v983, %v984
          %v986 = vrot.slane %v985, 1
          %v987 = vadd.f32 %v985, %v986
          %v988 = vadd.f32 %v854, %v987
          %989 = vst [vmem:[#allocation2 + $0x1] sm:$0x1] %v988
        $region48: #{tpu_custom_call.1} parent=35 // pred_fallthru
          _
        %p990 = scmp.eq.s32.totalorder %s26, 1
        // Predicated region
        $region53: #{tpu_custom_call.1} parent=35 // pred_check
          %p991 = pneg %p990
        $region54: #{tpu_custom_call.1} parent=35 // pred_check_branch
          %993 = sbr.rel (%p991) target = $region56
        $region55: #{tpu_custom_call.1} parent=35 // pred_region
          %v994 = vld [vmem:[#allocation2] sm:$0x1]
          %v995 = vmul.f32 %v994, 0.001953125
          %v996 = vld [vmem:[#allocation2 + $0x1] sm:$0x1]
          %v997 = vmul.f32 %v996, 0.001953125
          %v998 = vmul.f32 %v995, %v995
          %v999 = vsub.f32 %v997, %v998
          %v1000 = vadd.f32 %v999, 1e-05
          %v1001 = vrsqrt.pop %v1000
          %v1002 = vmul.f32 %v1001, %v1000
          %v1003 = vmul.f32 %v1002, %v1001
          %v1004 = vmul.f32 0.5, %v1003
          %v1005 = vsub.f32 1.5, %v1004
          %v1006 = vmul.f32 %v1001, %v1005
          %vm1007 = vweird.f32 %v1000
          %vm1008 = vweird.f32 %v1001
          %vm1009 = vmor %vm1007, %vm1008
          %v1010 = vsel %vm1009, %v1001, %v1006
          %v1011 = vld [vmem:[%s278] sm:$0x1]
          %v1012 = vmul.f32 %v1011, %v1010
          %v1013 = vld [vmem:[%s281] sm:$0x1]
          %v1014 = vmul.f32 %v995, %v1012
          %v1015 = vsub.f32 %v1013, %v1014
          %v1017 = vperm.slane %v1012, 0
          %v1019 = vmul.f32 %v614, %v1017
          %v1020 = vmul.f32 %v616, %v1017
          %v1021 = vmul.f32 %v619, %v1017
          %v1022 = vmul.f32 %v621, %v1017
          %v1023 = vmul.f32 %v624, %v1017
          %v1024 = vmul.f32 %v626, %v1017
          %v1025 = vmul.f32 %v629, %v1017
          %v1026 = vmul.f32 %v631, %v1017
          %v1027 = vmul.f32 %v634, %v1017
          %v1028 = vmul.f32 %v636, %v1017
          %v1029 = vmul.f32 %v639, %v1017
          %v1030 = vmul.f32 %v641, %v1017
          %v1031 = vmul.f32 %v644, %v1017
          %v1032 = vmul.f32 %v646, %v1017
          %v1033 = vmul.f32 %v649, %v1017
          %v1034 = vmul.f32 %v651, %v1017
          %v1035 = vmul.f32 %v654, %v1017
          %v1036 = vmul.f32 %v656, %v1017
          %v1037 = vmul.f32 %v659, %v1017
          %v1038 = vmul.f32 %v661, %v1017
          %v1039 = vmul.f32 %v664, %v1017
          %v1040 = vmul.f32 %v666, %v1017
          %v1041 = vmul.f32 %v669, %v1017
          %v1042 = vmul.f32 %v671, %v1017
          %v1043 = vmul.f32 %v674, %v1017
          %v1044 = vmul.f32 %v676, %v1017
          %v1045 = vmul.f32 %v679, %v1017
          %v1046 = vmul.f32 %v681, %v1017
          %v1047 = vmul.f32 %v684, %v1017
          %v1048 = vmul.f32 %v686, %v1017
          %v1049 = vmul.f32 %v689, %v1017
          %v1050 = vmul.f32 %v691, %v1017
          %v1051 = vmul.f32 %v694, %v1017
          %v1052 = vmul.f32 %v696, %v1017
          %v1053 = vmul.f32 %v699, %v1017
          %v1054 = vmul.f32 %v701, %v1017
          %v1055 = vmul.f32 %v704, %v1017
          %v1056 = vmul.f32 %v706, %v1017
          %v1057 = vmul.f32 %v709, %v1017
          %v1058 = vmul.f32 %v711, %v1017
          %v1059 = vmul.f32 %v714, %v1017
          %v1060 = vmul.f32 %v716, %v1017
          %v1061 = vmul.f32 %v719, %v1017
          %v1062 = vmul.f32 %v721, %v1017
          %v1063 = vmul.f32 %v724, %v1017
          %v1064 = vmul.f32 %v726, %v1017
          %v1065 = vmul.f32 %v729, %v1017
          %v1066 = vmul.f32 %v731, %v1017
          %v1067 = vmul.f32 %v734, %v1017
          %v1068 = vmul.f32 %v736, %v1017
          %v1069 = vmul.f32 %v739, %v1017
          %v1070 = vmul.f32 %v741, %v1017
          %v1071 = vmul.f32 %v744, %v1017
          %v1072 = vmul.f32 %v746, %v1017
          %v1073 = vmul.f32 %v749, %v1017
          %v1074 = vmul.f32 %v751, %v1017
          %v1075 = vmul.f32 %v754, %v1017
          %v1076 = vmul.f32 %v756, %v1017
          %v1077 = vmul.f32 %v759, %v1017
          %v1078 = vmul.f32 %v761, %v1017
          %v1079 = vmul.f32 %v764, %v1017
          %v1080 = vmul.f32 %v766, %v1017
          %v1081 = vmul.f32 %v769, %v1017
          %v1082 = vmul.f32 %v771, %v1017
          %v1084 = vperm.slane %v1015, 0
          %v1086 = vadd.f32 %v1019, %v1084
          %v1087 = vadd.f32 %v1020, %v1084
          %v1088 = vadd.f32 %v1021, %v1084
          %v1089 = vadd.f32 %v1022, %v1084
          %v1090 = vadd.f32 %v1023, %v1084
          %v1091 = vadd.f32 %v1024, %v1084
          %v1092 = vadd.f32 %v1025, %v1084
          %v1093 = vadd.f32 %v1026, %v1084
          %v1094 = vadd.f32 %v1027, %v1084
          %v1095 = vadd.f32 %v1028, %v1084
          %v1096 = vadd.f32 %v1029, %v1084
          %v1097 = vadd.f32 %v1030, %v1084
          %v1098 = vadd.f32 %v1031, %v1084
          %v1099 = vadd.f32 %v1032, %v1084
          %v1100 = vadd.f32 %v1033, %v1084
          %v1101 = vadd.f32 %v1034, %v1084
          %v1102 = vadd.f32 %v1035, %v1084
          %v1103 = vadd.f32 %v1036, %v1084
          %v1104 = vadd.f32 %v1037, %v1084
          %v1105 = vadd.f32 %v1038, %v1084
          %v1106 = vadd.f32 %v1039, %v1084
          %v1107 = vadd.f32 %v1040, %v1084
          %v1108 = vadd.f32 %v1041, %v1084
          %v1109 = vadd.f32 %v1042, %v1084
          %v1110 = vadd.f32 %v1043, %v1084
          %v1111 = vadd.f32 %v1044, %v1084
          %v1112 = vadd.f32 %v1045, %v1084
          %v1113 = vadd.f32 %v1046, %v1084
          %v1114 = vadd.f32 %v1047, %v1084
          %v1115 = vadd.f32 %v1048, %v1084
          %v1116 = vadd.f32 %v1049, %v1084
          %v1117 = vadd.f32 %v1050, %v1084
          %v1118 = vadd.f32 %v1051, %v1084
          %v1119 = vadd.f32 %v1052, %v1084
          %v1120 = vadd.f32 %v1053, %v1084
          %v1121 = vadd.f32 %v1054, %v1084
          %v1122 = vadd.f32 %v1055, %v1084
          %v1123 = vadd.f32 %v1056, %v1084
          %v1124 = vadd.f32 %v1057, %v1084
          %v1125 = vadd.f32 %v1058, %v1084
          %v1126 = vadd.f32 %v1059, %v1084
          %v1127 = vadd.f32 %v1060, %v1084
          %v1128 = vadd.f32 %v1061, %v1084
          %v1129 = vadd.f32 %v1062, %v1084
          %v1130 = vadd.f32 %v1063, %v1084
          %v1131 = vadd.f32 %v1064, %v1084
          %v1132 = vadd.f32 %v1065, %v1084
          %v1133 = vadd.f32 %v1066, %v1084
          %v1134 = vadd.f32 %v1067, %v1084
          %v1135 = vadd.f32 %v1068, %v1084
          %v1136 = vadd.f32 %v1069, %v1084
          %v1137 = vadd.f32 %v1070, %v1084
          %v1138 = vadd.f32 %v1071, %v1084
          %v1139 = vadd.f32 %v1072, %v1084
          %v1140 = vadd.f32 %v1073, %v1084
          %v1141 = vadd.f32 %v1074, %v1084
          %v1142 = vadd.f32 %v1075, %v1084
          %v1143 = vadd.f32 %v1076, %v1084
          %v1144 = vadd.f32 %v1077, %v1084
          %v1145 = vadd.f32 %v1078, %v1084
          %v1146 = vadd.f32 %v1079, %v1084
          %v1147 = vadd.f32 %v1080, %v1084
          %v1148 = vadd.f32 %v1081, %v1084
          %v1149 = vadd.f32 %v1082, %v1084
          %v1150 = vmax.f32 %v1086, 0.0
          %v1151 = vmax.f32 %v1087, 0.0
          %v1152 = vmax.f32 %v1088, 0.0
          %v1153 = vmax.f32 %v1089, 0.0
          %v1154 = vmax.f32 %v1090, 0.0
          %v1155 = vmax.f32 %v1091, 0.0
          %v1156 = vmax.f32 %v1092, 0.0
          %v1157 = vmax.f32 %v1093, 0.0
          %v1158 = vmax.f32 %v1094, 0.0
          %v1159 = vmax.f32 %v1095, 0.0
          %v1160 = vmax.f32 %v1096, 0.0
          %v1161 = vmax.f32 %v1097, 0.0
          %v1162 = vmax.f32 %v1098, 0.0
          %v1163 = vmax.f32 %v1099, 0.0
          %v1164 = vmax.f32 %v1100, 0.0
          %v1165 = vmax.f32 %v1101, 0.0
          %v1166 = vmax.f32 %v1102, 0.0
          %v1167 = vmax.f32 %v1103, 0.0
          %v1168 = vmax.f32 %v1104, 0.0
          %v1169 = vmax.f32 %v1105, 0.0
          %v1170 = vmax.f32 %v1106, 0.0
          %v1171 = vmax.f32 %v1107, 0.0
          %v1172 = vmax.f32 %v1108, 0.0
          %v1173 = vmax.f32 %v1109, 0.0
          %v1174 = vmax.f32 %v1110, 0.0
          %v1175 = vmax.f32 %v1111, 0.0
          %v1176 = vmax.f32 %v1112, 0.0
          %v1177 = vmax.f32 %v1113, 0.0
          %v1178 = vmax.f32 %v1114, 0.0
          %v1179 = vmax.f32 %v1115, 0.0
          %v1180 = vmax.f32 %v1116, 0.0
          %v1181 = vmax.f32 %v1117, 0.0
          %v1182 = vmax.f32 %v1118, 0.0
          %v1183 = vmax.f32 %v1119, 0.0
          %v1184 = vmax.f32 %v1120, 0.0
          %v1185 = vmax.f32 %v1121, 0.0
          %v1186 = vmax.f32 %v1122, 0.0
          %v1187 = vmax.f32 %v1123, 0.0
          %v1188 = vmax.f32 %v1124, 0.0
          %v1189 = vmax.f32 %v1125, 0.0
          %v1190 = vmax.f32 %v1126, 0.0
          %v1191 = vmax.f32 %v1127, 0.0
          %v1192 = vmax.f32 %v1128, 0.0
          %v1193 = vmax.f32 %v1129, 0.0
          %v1194 = vmax.f32 %v1130, 0.0
          %v1195 = vmax.f32 %v1131, 0.0
          %v1196 = vmax.f32 %v1132, 0.0
          %v1197 = vmax.f32 %v1133, 0.0
          %v1198 = vmax.f32 %v1134, 0.0
          %v1199 = vmax.f32 %v1135, 0.0
          %v1200 = vmax.f32 %v1136, 0.0
          %v1201 = vmax.f32 %v1137, 0.0
          %v1202 = vmax.f32 %v1138, 0.0
          %v1203 = vmax.f32 %v1139, 0.0
          %v1204 = vmax.f32 %v1140, 0.0
          %v1205 = vmax.f32 %v1141, 0.0
          %v1206 = vmax.f32 %v1142, 0.0
          %v1207 = vmax.f32 %v1143, 0.0
          %v1208 = vmax.f32 %v1144, 0.0
          %v1209 = vmax.f32 %v1145, 0.0
          %v1210 = vmax.f32 %v1146, 0.0
          %v1211 = vmax.f32 %v1147, 0.0
          %v1212 = vmax.f32 %v1148, 0.0
          %v1213 = vmax.f32 %v1149, 0.0
          %1214 = vst [vmem:[%s274] sm:$0xff] %v1150
          %1215 = vst [vmem:[%s274 + $0x8] sm:$0xff] %v1151
          %1216 = vst [vmem:[%s274 + $0x10] sm:$0xff] %v1152
          %1217 = vst [vmem:[%s274 + $0x18] sm:$0xff] %v1153
          %1218 = vst [vmem:[%s274 + $0x20] sm:$0xff] %v1154
          %1219 = vst [vmem:[%s274 + $0x28] sm:$0xff] %v1155
          %1220 = vst [vmem:[%s274 + $0x30] sm:$0xff] %v1156
          %1221 = vst [vmem:[%s274 + $0x38] sm:$0xff] %v1157
          %1222 = vst [vmem:[%s274 + $0x40] sm:$0xff] %v1158
          %1223 = vst [vmem:[%s274 + $0x48] sm:$0xff] %v1159
          %1224 = vst [vmem:[%s274 + $0x50] sm:$0xff] %v1160
          %1225 = vst [vmem:[%s274 + $0x58] sm:$0xff] %v1161
          %1226 = vst [vmem:[%s274 + $0x60] sm:$0xff] %v1162
          %1227 = vst [vmem:[%s274 + $0x68] sm:$0xff] %v1163
          %1228 = vst [vmem:[%s274 + $0x70] sm:$0xff] %v1164
          %1229 = vst [vmem:[%s274 + $0x78] sm:$0xff] %v1165
          %1230 = vst [vmem:[%s274 + $0x80] sm:$0xff] %v1166
          %1231 = vst [vmem:[%s274 + $0x88] sm:$0xff] %v1167
          %1232 = vst [vmem:[%s274 + $0x90] sm:$0xff] %v1168
          %1233 = vst [vmem:[%s274 + $0x98] sm:$0xff] %v1169
          %1234 = vst [vmem:[%s274 + $0xa0] sm:$0xff] %v1170
          %1235 = vst [vmem:[%s274 + $0xa8] sm:$0xff] %v1171
          %1236 = vst [vmem:[%s274 + $0xb0] sm:$0xff] %v1172
          %1237 = vst [vmem:[%s274 + $0xb8] sm:$0xff] %v1173
          %1238 = vst [vmem:[%s274 + $0xc0] sm:$0xff] %v1174
          %1239 = vst [vmem:[%s274 + $0xc8] sm:$0xff] %v1175
          %1240 = vst [vmem:[%s274 + $0xd0] sm:$0xff] %v1176
          %1241 = vst [vmem:[%s274 + $0xd8] sm:$0xff] %v1177
          %1242 = vst [vmem:[%s274 + $0xe0] sm:$0xff] %v1178
          %1243 = vst [vmem:[%s274 + $0xe8] sm:$0xff] %v1179
          %1244 = vst [vmem:[%s274 + $0xf0] sm:$0xff] %v1180
          %1245 = vst [vmem:[%s274 + $0xf8] sm:$0xff] %v1181
          %1246 = vst [vmem:[%s274 + $0x100] sm:$0xff] %v1182
          %1247 = vst [vmem:[%s274 + $0x108] sm:$0xff] %v1183
          %1248 = vst [vmem:[%s274 + $0x110] sm:$0xff] %v1184
          %1249 = vst [vmem:[%s274 + $0x118] sm:$0xff] %v1185
          %1250 = vst [vmem:[%s274 + $0x120] sm:$0xff] %v1186
          %1251 = vst [vmem:[%s274 + $0x128] sm:$0xff] %v1187
          %1252 = vst [vmem:[%s274 + $0x130] sm:$0xff] %v1188
          %1253 = vst [vmem:[%s274 + $0x138] sm:$0xff] %v1189
          %1254 = vst [vmem:[%s274 + $0x140] sm:$0xff] %v1190
          %1255 = vst [vmem:[%s274 + $0x148] sm:$0xff] %v1191
          %1256 = vst [vmem:[%s274 + $0x150] sm:$0xff] %v1192
          %1257 = vst [vmem:[%s274 + $0x158] sm:$0xff] %v1193
          %1258 = vst [vmem:[%s274 + $0x160] sm:$0xff] %v1194
          %1259 = vst [vmem:[%s274 + $0x168] sm:$0xff] %v1195
          %1260 = vst [vmem:[%s274 + $0x170] sm:$0xff] %v1196
          %1261 = vst [vmem:[%s274 + $0x178] sm:$0xff] %v1197
          %1262 = vst [vmem:[%s274 + $0x180] sm:$0xff] %v1198
          %1263 = vst [vmem:[%s274 + $0x188] sm:$0xff] %v1199
          %1264 = vst [vmem:[%s274 + $0x190] sm:$0xff] %v1200
          %1265 = vst [vmem:[%s274 + $0x198] sm:$0xff] %v1201
          %1266 = vst [vmem:[%s274 + $0x1a0] sm:$0xff] %v1202
          %1267 = vst [vmem:[%s274 + $0x1a8] sm:$0xff] %v1203
          %1268 = vst [vmem:[%s274 + $0x1b0] sm:$0xff] %v1204
          %1269 = vst [vmem:[%s274 + $0x1b8] sm:$0xff] %v1205
          %1270 = vst [vmem:[%s274 + $0x1c0] sm:$0xff] %v1206
          %1271 = vst [vmem:[%s274 + $0x1c8] sm:$0xff] %v1207
          %1272 = vst [vmem:[%s274 + $0x1d0] sm:$0xff] %v1208
          %1273 = vst [vmem:[%s274 + $0x1d8] sm:$0xff] %v1209
          %1274 = vst [vmem:[%s274 + $0x1e0] sm:$0xff] %v1210
          %1275 = vst [vmem:[%s274 + $0x1e8] sm:$0xff] %v1211
          %1276 = vst [vmem:[%s274 + $0x1f0] sm:$0xff] %v1212
          %1277 = vst [vmem:[%s274 + $0x1f8] sm:$0xff] %v1213
        $region56: #{tpu_custom_call.1} parent=35 // pred_fallthru
          _
        %s1278 = sand.u32 %s157, 1
        %s1279 = scalar_lea.sflag [#allocation5], %s1278
        %s1280 = sand.u32 %s157, 1
        %s1281 = smul.addr %s1280, 512
        %s1282 = scalar_lea.vmem [#allocation8], %s1281
        // Predicated region
        $region57: #{tpu_custom_call.1} parent=35 // pred_check
          %p1283 = pneg %p167
        $region58: #{tpu_custom_call.1} parent=35 // pred_check_branch
          %1285 = sbr.rel (%p1283) target = $region60
        $region59: #{tpu_custom_call.1} parent=35 // pred_region
          %s1286 = smul.u32 %s27, %s26
          %s1287 = smul.u32 64, %s1286
          %1289 = vsyncadd %s1279, 0
          %s1290 = smul.addr %s25, 64
          %s1291 = sadd.s32 %s1287, %s1290
          %s1292 = smul.addr %s1291, 8
          %s1293 = scalar_lea.hbm %s4, %s1292
          %s1294 = sshll.u32 %s1282, 4
          %s1295 = int_to_ptr.vmem [resolvable:$true] %s1294
          %s1296 = sshll.u32 %s1293, 4
          %s1297 = int_to_ptr.hbm [resolvable:$true] %s1296
          %1302 = dma.vmem_to_hbm [thread:$0]  %s1295, 8192, %s1297, %s1279, 128, 128, 8
        $region60: #{tpu_custom_call.1} parent=35 // pred_fallthru
          _
      $region36: #{tpu_custom_call.1} parent=5 // pred_fallthru
        _
      %p1303 = scmp.le.s32.totalorder 2, %s15
      // Predicated region
      $region61: #{tpu_custom_call.1} parent=5 // pred_check
        %p1304 = pneg %p1303
      $region62: #{tpu_custom_call.1} parent=5 // pred_check_branch
        %1306 = sbr.rel (%p1304) target = $region64
      $region63: #{tpu_custom_call.1} parent=5 // pred_region
        %s1307 = ssub.s32 %s15, 2
        // Predicated region
        $region65: #{tpu_custom_call.1} parent=63 // pred_check
          %p1308 = pneg %p173
        $region66: #{tpu_custom_call.1} parent=63 // pred_check_branch
          %1310 = sbr.rel (%p1308) target = $region68
        $region67: #{tpu_custom_call.1} parent=63 // pred_region
          %s1311 = sand.u32 %s158, 1
          %s1312 = scalar_lea.sflag [#allocation5], %s1311
          %s1313 = sand.u32 %s158, 1
          %s1314 = smul.addr %s1313, 512
          %s1315 = scalar_lea.vmem [#allocation8], %s1314
          %1317 = dma.done %s1312, 8192
        $region68: #{tpu_custom_call.1} parent=63 // pred_fallthru
          _
      $region64: #{tpu_custom_call.1} parent=5 // pred_fallthru
        _
    $region6: #{tpu_custom_call.1} parent=1 // loop_footer
      %s19 = sadd.s32 1, %s15
    $region7: #{tpu_custom_call.1} parent=1 // loop_footer_branch
      %14 = sbr.rel target = $region3
    $region8: #{tpu_custom_call.1} parent=1 // loop_exit
      _
    %1318 = vsyncpa [#allocation4], 1
    %s1319 = scalar_lea.sflag [#allocation4], 1
    %1320 = vsyncpa %s1319, 1
    %1321 = vsyncpa [#allocation7], 1
    %1322 = vsyncpa [#allocation5], 1
    %s1323 = scalar_lea.sflag [#allocation5], 1
    %1324 = vsyncpa %s1323, 1

</llo_original>
